<compile_context>
chip_gen: v7x
topology: tpu7x:2x2x1
jax: 0.10.0
libtpu: 0.0.40
codegen_flags: <defaults>
</compile_context>

<pallas_src>
import functools

import jax
import jax.numpy as jnp
from jax import lax
from jax.experimental import pallas as pl
from jax.experimental.pallas import tpu as pltpu


def _fused_conv_bn_relu_kernel(p_ref, w_ref, g_ref, b_ref, o_ref, *, eps):
    """Fused conv (as matmul) + training-mode BatchNorm + ReLU.

    p_ref: (N, K, P)    im2col patches, K = Cin*KH*KW, P = H_out*W_out
    w_ref: (Cout, K)    conv weight (flattened OIHW)
    g_ref: (Cout, 1)    BN gamma
    b_ref: (Cout, 1)    BN beta
    o_ref: (N, Cout, P) output (NCHW with H,W flattened) -- lane-dense stores
    """
    n_batch, _, P = p_ref.shape
    Cout = w_ref.shape[0]
    w = w_ref[...]

    # Conv as a single MXU matmul per batch element (all taps folded into K).
    ys = [jnp.dot(w, p_ref[n], preferred_element_type=jnp.float32)
          for n in range(n_batch)]                       # each (Cout, P), f32

    # Training-mode (biased) batch statistics over (N, H, W), per channel.
    cnt = jnp.float32(n_batch * P)
    tot = jnp.zeros((Cout, 1), jnp.float32)
    for y in ys:
        tot = tot + jnp.sum(y, axis=1, keepdims=True)
    mean = tot / cnt
    sq = jnp.zeros((Cout, 1), jnp.float32)
    for y in ys:
        d = y - mean
        sq = sq + jnp.sum(d * d, axis=1, keepdims=True)  # two-pass variance
    var = sq / cnt

    inv = g_ref[...] / jnp.sqrt(var + eps)               # (Cout, 1)
    beta = b_ref[...]
    for n in range(n_batch):
        o_ref[n] = jnp.maximum((ys[n] - mean) * inv + beta,
                               0.0).astype(o_ref.dtype)


def conv_bn_relu_pallas(x_nchw, w_oihw, gamma, beta, *, stride=1, padding=1,
                        eps=1e-5, compute_dtype=jnp.float32):
    """Forward of conv_bn_relu: Conv2d(bias=False) -> BatchNorm2d(train) -> ReLU."""
    N, Cin, H, W = x_nchw.shape
    Cout, Cin_w, KH, KW = w_oihw.shape
    assert Cin_w == Cin
    H_out = (H + 2 * padding - KH) // stride + 1
    W_out = (W + 2 * padding - KW) // stride + 1
    K = Cin * KH * KW
    P = H_out * W_out

    # im2col in the wrapper (pure data movement: identity-kernel conv).
    # Output feature ordering is (Cin, KH, KW) flattened, which matches
    # w_oihw.reshape(Cout, Cin*KH*KW) exactly.
    patches = lax.conv_general_dilated_patches(
        x_nchw.astype(compute_dtype), (KH, KW), (stride, stride),
        [(padding, padding), (padding, padding)],
        dimension_numbers=("NCHW", "OIHW", "NCHW"))      # (N, K, H_out, W_out)
    patches = patches.reshape(N, K, P)                   # lane dim = P (dense)

    w2d = w_oihw.reshape(Cout, K).astype(compute_dtype)
    gamma2d = gamma.astype(jnp.float32).reshape(Cout, 1)
    beta2d = beta.astype(jnp.float32).reshape(Cout, 1)

    # Everything fits comfortably in VMEM at these sizes -> single kernel
    # invocation (no grid), fully resident, no HBM round-trip of the conv
    # output between conv and BN/ReLU.
    # TODO(synk): for real PeleeNet layer sizes, tile P/N over a 'parallel'
    # grid with per-tile partial stats reduced in the wrapper (v7x megacore,
    # 64 MiB VMEM), instead of the whole-problem-in-VMEM layout used here.
    out = pl.pallas_call(
        functools.partial(_fused_conv_bn_relu_kernel, eps=eps),
        out_shape=jax.ShapeDtypeStruct((N, Cout, P), jnp.float32),
        in_specs=[
            pl.BlockSpec(memory_space=pltpu.MemorySpace.VMEM),
            pl.BlockSpec(memory_space=pltpu.MemorySpace.VMEM),
            pl.BlockSpec(memory_space=pltpu.MemorySpace.VMEM),
            pl.BlockSpec(memory_space=pltpu.MemorySpace.VMEM),
        ],
        out_specs=pl.BlockSpec(memory_space=pltpu.MemorySpace.VMEM),
    )(patches, w2d, gamma2d, beta2d)

    return out.reshape(N, Cout, H_out, W_out)            # already NCHW


if __name__ == "__main__":
    key = jax.random.PRNGKey(0)
    k1, k2, k3, k4 = jax.random.split(key, 4)

    # Module config: conv_bn_relu(nin=4, nout=8, kernel_size=3, stride=1, padding=1)
    N, Cin, H, W = 2, 4, 16, 16
    Cout, Ksz, stride, pad = 8, 3, 1, 1

    x = jax.random.normal(k1, (N, Cin, H, W), jnp.float32)
    w = jax.random.normal(k2, (Cout, Cin, Ksz, Ksz), jnp.float32) * 0.1   # OIHW
    gamma = 1.0 + 0.1 * jax.random.normal(k3, (Cout,), jnp.float32)       # BN weight
    beta = 0.1 * jax.random.normal(k4, (Cout,), jnp.float32)              # BN bias

    out = conv_bn_relu_pallas(x, w, gamma, beta, stride=stride, padding=pad)
    out = jax.block_until_ready(out)

    # Pure-JAX reference (PyTorch training-mode forward: batch stats, biased var).
    y_ref = lax.conv_general_dilated(
        x, w, (stride, stride), [(pad, pad), (pad, pad)],
        dimension_numbers=("NCHW", "OIHW", "NCHW"))
    mean_r = y_ref.mean(axis=(0, 2, 3), keepdims=True)
    var_r = y_ref.var(axis=(0, 2, 3), keepdims=True)
    ref = (y_ref - mean_r) / jnp.sqrt(var_r + 1e-5)
    ref = ref * gamma.reshape(1, -1, 1, 1) + beta.reshape(1, -1, 1, 1)
    ref = jnp.maximum(ref, 0.0)

    assert out.shape == (N, Cout, H, W), out.shape
    assert jnp.allclose(out, ref, atol=1e-4, rtol=1e-4), \
        float(jnp.abs(out - ref).max())

    print("KERNEL_OK")
</pallas_src>

<mosaic_0001>
module attributes {stable_mosaic.version = 11 : i64} {
  func.func @_fused_conv_bn_relu_kernel(%arg0: memref<2x36x256xf32, #tpu.memory_space<vmem>>, %arg1: memref<8x36xf32, #tpu.memory_space<vmem>>, %arg2: memref<8x1xf32, #tpu.memory_space<vmem>>, %arg3: memref<8x1xf32, #tpu.memory_space<vmem>>, %arg4: memref<2x8x256xf32, #tpu.memory_space<vmem>>) attributes {dimension_semantics = [], scalar_prefetch = 0 : i64, scratch_operands = 0 : i64, tpu.core_type = #tpu.core_type<tc>} {
    %c0 = arith.constant 0 : index
    %c0_0 = arith.constant 0 : index
    %0 = vector.load %arg1[%c0, %c0_0] : memref<8x36xf32, #tpu.memory_space<vmem>>, vector<8x36xf32>
    %c0_1 = arith.constant 0 : index
    %c0_2 = arith.constant 0 : index
    %c0_3 = arith.constant 0 : index
    %1 = vector.load %arg0[%c0_1, %c0_2, %c0_3] : memref<2x36x256xf32, #tpu.memory_space<vmem>>, vector<1x36x256xf32>
    %2 = vector.shape_cast %1 : vector<1x36x256xf32> to vector<36x256xf32>
    %cst = arith.constant dense<0.000000e+00> : vector<8x256xf32>
    %3 = tpu.matmul %0, %2, %cst {dimension_numbers = #tpu.dot_dimension_numbers<[1], [0], [0], [1], [0, 0, 1, 1], [], []>} : vector<8x36xf32>, vector<36x256xf32>, vector<8x256xf32> -> vector<8x256xf32>
    %c1 = arith.constant 1 : index
    %c0_4 = arith.constant 0 : index
    %c0_5 = arith.constant 0 : index
    %4 = vector.load %arg0[%c1, %c0_4, %c0_5] : memref<2x36x256xf32, #tpu.memory_space<vmem>>, vector<1x36x256xf32>
    %5 = vector.shape_cast %4 : vector<1x36x256xf32> to vector<36x256xf32>
    %cst_6 = arith.constant dense<0.000000e+00> : vector<8x256xf32>
    %6 = tpu.matmul %0, %5, %cst_6 {dimension_numbers = #tpu.dot_dimension_numbers<[1], [0], [0], [1], [0, 0, 1, 1], [], []>} : vector<8x36xf32>, vector<36x256xf32>, vector<8x256xf32> -> vector<8x256xf32>
    %cst_7 = arith.constant 0.000000e+00 : f32
    %7 = vector.broadcast %cst_7 : f32 to vector<8x1xf32>
    %cst_8 = arith.constant dense<0.000000e+00> : vector<8xf32>
    %8 = vector.multi_reduction <add>, %3, %cst_8 [1] : vector<8x256xf32> to vector<8xf32>
    %9 = vector.shape_cast %8 : vector<8xf32> to vector<8x1xf32>
    %10 = arith.addf %7, %9 : vector<8x1xf32>
    %cst_9 = arith.constant dense<0.000000e+00> : vector<8xf32>
    %11 = vector.multi_reduction <add>, %6, %cst_9 [1] : vector<8x256xf32> to vector<8xf32>
    %12 = vector.shape_cast %11 : vector<8xf32> to vector<8x1xf32>
    %13 = arith.addf %10, %12 : vector<8x1xf32>
    %cst_10 = arith.constant 5.120000e+02 : f32
    %14 = vector.broadcast %cst_10 : f32 to vector<8x1xf32>
    %15 = arith.divf %13, %14 : vector<8x1xf32>
    %cst_11 = arith.constant 0.000000e+00 : f32
    %16 = vector.broadcast %cst_11 : f32 to vector<8x1xf32>
    %17 = vector.broadcast %15 : vector<8x1xf32> to vector<8x256xf32>
    %18 = arith.subf %3, %17 : vector<8x256xf32>
    %19 = arith.mulf %18, %18 : vector<8x256xf32>
    %cst_12 = arith.constant dense<0.000000e+00> : vector<8xf32>
    %20 = vector.multi_reduction <add>, %19, %cst_12 [1] : vector<8x256xf32> to vector<8xf32>
    %21 = vector.shape_cast %20 : vector<8xf32> to vector<8x1xf32>
    %22 = arith.addf %16, %21 : vector<8x1xf32>
    %23 = vector.broadcast %15 : vector<8x1xf32> to vector<8x256xf32>
    %24 = arith.subf %6, %23 : vector<8x256xf32>
    %25 = arith.mulf %24, %24 : vector<8x256xf32>
    %cst_13 = arith.constant dense<0.000000e+00> : vector<8xf32>
    %26 = vector.multi_reduction <add>, %25, %cst_13 [1] : vector<8x256xf32> to vector<8xf32>
    %27 = vector.shape_cast %26 : vector<8xf32> to vector<8x1xf32>
    %28 = arith.addf %22, %27 : vector<8x1xf32>
    %cst_14 = arith.constant 5.120000e+02 : f32
    %29 = vector.broadcast %cst_14 : f32 to vector<8x1xf32>
    %30 = arith.divf %28, %29 : vector<8x1xf32>
    %c0_15 = arith.constant 0 : index
    %c0_16 = arith.constant 0 : index
    %31 = vector.load %arg2[%c0_15, %c0_16] : memref<8x1xf32, #tpu.memory_space<vmem>>, vector<8x1xf32>
    %cst_17 = arith.constant 9.99999974E-6 : f32
    %32 = vector.broadcast %cst_17 : f32 to vector<8x1xf32>
    %33 = arith.addf %30, %32 : vector<8x1xf32>
    %34 = math.sqrt %33 : vector<8x1xf32>
    %35 = arith.divf %31, %34 : vector<8x1xf32>
    %c0_18 = arith.constant 0 : index
    %c0_19 = arith.constant 0 : index
    %36 = vector.load %arg3[%c0_18, %c0_19] : memref<8x1xf32, #tpu.memory_space<vmem>>, vector<8x1xf32>
    %37 = vector.broadcast %15 : vector<8x1xf32> to vector<8x256xf32>
    %38 = arith.subf %3, %37 : vector<8x256xf32>
    %39 = vector.broadcast %35 : vector<8x1xf32> to vector<8x256xf32>
    %40 = arith.mulf %38, %39 : vector<8x256xf32>
    %41 = vector.broadcast %36 : vector<8x1xf32> to vector<8x256xf32>
    %42 = arith.addf %40, %41 : vector<8x256xf32>
    %cst_20 = arith.constant 0.000000e+00 : f32
    %43 = vector.broadcast %cst_20 : f32 to vector<8x256xf32>
    %44 = arith.maximumf %42, %43 : vector<8x256xf32>
    %c0_21 = arith.constant 0 : index
    %c0_22 = arith.constant 0 : index
    %c0_23 = arith.constant 0 : index
    %45 = vector.load %arg4[%c0_21, %c0_22, %c0_23] : memref<2x8x256xf32, #tpu.memory_space<vmem>>, vector<1x8x256xf32>
    %46 = vector.shape_cast %45 : vector<1x8x256xf32> to vector<8x256xf32>
    %47 = vector.shape_cast %44 : vector<8x256xf32> to vector<1x8x256xf32>
    tpu.vector_store %arg4[%c0_21, %c0_22, %c0_23], %47 {strides = array<i32>} : memref<2x8x256xf32, #tpu.memory_space<vmem>>, vector<1x8x256xf32>,
    %48 = vector.broadcast %15 : vector<8x1xf32> to vector<8x256xf32>
    %49 = arith.subf %6, %48 : vector<8x256xf32>
    %50 = vector.broadcast %35 : vector<8x1xf32> to vector<8x256xf32>
    %51 = arith.mulf %49, %50 : vector<8x256xf32>
    %52 = vector.broadcast %36 : vector<8x1xf32> to vector<8x256xf32>
    %53 = arith.addf %51, %52 : vector<8x256xf32>
    %cst_24 = arith.constant 0.000000e+00 : f32
    %54 = vector.broadcast %cst_24 : f32 to vector<8x256xf32>
    %55 = arith.maximumf %53, %54 : vector<8x256xf32>
    %c1_25 = arith.constant 1 : index
    %c0_26 = arith.constant 0 : index
    %c0_27 = arith.constant 0 : index
    %56 = vector.load %arg4[%c1_25, %c0_26, %c0_27] : memref<2x8x256xf32, #tpu.memory_space<vmem>>, vector<1x8x256xf32>
    %57 = vector.shape_cast %56 : vector<1x8x256xf32> to vector<8x256xf32>
    %58 = vector.shape_cast %55 : vector<8x256xf32> to vector<1x8x256xf32>
    tpu.vector_store %arg4[%c1_25, %c0_26, %c0_27], %58 {strides = array<i32>} : memref<2x8x256xf32, #tpu.memory_space<vmem>>, vector<1x8x256xf32>,
    return
  }
}

</mosaic_0001>

<llo_original>
// kernel: tpu_custom_call.1
$region0: #{tpu_custom_call.1}
  #allocation0 [shape = 'u32[]', space=smem, size = 0x4, offset = 0x4, fixed_abs, tag = 'smem constant byte address 0x4 - core index']
  #allocation1 [shape = 'u32[144,128]{1,0:T(1,128)}', space=vmem, size = 0x12000, scoped, tag = 'internal scratch']
  %s0 = inlined_call_operand.vmem [shape: f32[2,36,256], index: 0, kind: input, shape index: {}]
  %s1 = inlined_call_operand.vmem [shape: f32[8,36], index: 1, kind: input, shape index: {}]
  %s2 = inlined_call_operand.vmem [shape: f32[8,1], index: 2, kind: input, shape index: {}]
  %s3 = inlined_call_operand.vmem [shape: f32[8,1], index: 3, kind: input, shape index: {}]
  %s4 = inlined_call_operand.hbm [shape: f32[2,8,256], index: 4, kind: output, shape index: {}]
  %s5 = sld [smem:[#allocation0]]
  $region26: #{tpu_custom_call.1} parent=0
    _
  %s7 = ssub.s32 1, %s5
  %s8 = scalar_select 0, %s7, %s5
  $region1: #{tpu_custom_call.1} parent=0
    #allocation2 [shape = 'u8[16384]{0}', space=vmem, size = 0x4000, scoped, tag = 'output window, operand 0, single buffered']
    #allocation3 [shape = 's32[1]{0}', space=sflag, size = 0x4, scoped, tag = 'scoped memory for tpu_custom_call.1']
    %9 = vsyncpa [#allocation3], 0
    // Predicated region
    $region2: #{tpu_custom_call.1} parent=1 // pred_check
      _
    $region3: #{tpu_custom_call.1} parent=1 // pred_check_branch
      %11 = sbr.rel (0) target = $region5
    $region4: #{tpu_custom_call.1} parent=1 // pred_region
      _
    $region5: #{tpu_custom_call.1} parent=1 // pred_fallthru
      _
    // Predicated region
    $region6: #{tpu_custom_call.1} parent=1 // pred_check
      _
    $region7: #{tpu_custom_call.1} parent=1 // pred_check_branch
      %13 = sbr.rel (0) target = $region9
    $region8: #{tpu_custom_call.1} parent=1 // pred_region
      _
    $region9: #{tpu_custom_call.1} parent=1 // pred_fallthru
      _
    // Predicated region
    $region10: #{tpu_custom_call.1} parent=1 // pred_check
      _
    $region11: #{tpu_custom_call.1} parent=1 // pred_check_branch
      %15 = sbr.rel (0) target = $region13
    $region12: #{tpu_custom_call.1} parent=1 // pred_region
      _
    $region13: #{tpu_custom_call.1} parent=1 // pred_fallthru
      _
    // Predicated region
    $region14: #{tpu_custom_call.1} parent=1 // pred_check
      _
    $region15: #{tpu_custom_call.1} parent=1 // pred_check_branch
      %17 = sbr.rel (0) target = $region17
    $region16: #{tpu_custom_call.1} parent=1 // pred_region
      _
    $region17: #{tpu_custom_call.1} parent=1 // pred_fallthru
      _
    %v18 = vld [vmem:[%s1] sm:$0xff]
    %v19 = vld [vmem:[%s0] sm:$0xff]
    %v20 = vld [vmem:[%s0 + $0x8] sm:$0xff]
    %v21 = vld [vmem:[%s0 + $0x10] sm:$0xff]
    %v22 = vld [vmem:[%s0 + $0x18] sm:$0xff]
    %v23 = vld [vmem:[%s0 + $0x20] sm:$0xff]
    %v24 = vld [vmem:[%s0 + $0x28] sm:$0xff]
    %v25 = vld [vmem:[%s0 + $0x30] sm:$0xff]
    %v26 = vld [vmem:[%s0 + $0x38] sm:$0xff]
    %v27 = vld [vmem:[%s0 + $0x40] sm:$0xf]
    %v28 = vld [vmem:[%s0 + $0x48] sm:$0xf]
    %vm29 = vcmask 293888
    %v31 = vsel %vm29, %v18, 0
    %vm33 = vcmask 1043456
    %v35 = vsel %vm33, %v27, 0
    %v38 = vsel %vm33, %v28, 0
    %40 = vmatprep.subr.mxu0 %v20
    %41 = vmatpush1.msra.mxu0 %v19
    %42 = vmatprep.subr.mxu0 %v22
    %43 = vmatpush1.msra.mxu0 %v21
    %44 = vmatprep.subr.mxu0 %v24
    %45 = vmatpush1.msra.mxu0 %v23
    %46 = vmatprep.subr.mxu0 %v26
    %47 = vmatpush1.msra.mxu0 %v25
    %48 = vmatprep.subr.mxu0 %v38
    %49 = vmatpush1.msra.mxu0 %v35
    %50 = vmatprep.subr.mxu0 0.0
    %51 = vmatpush1.msra.mxu0 0.0
    %52 = vmatprep.subr.mxu0 0.0
    %53 = vmatpush1.msra.mxu0 0.0
    %54 = vmatprep.subr.mxu0 0.0
    %55 = vmatpush1.msra.mxu0 0.0
    %56 = vmatprep.subr.mxu0 0.0
    %57 = vmatpush1.msra.mxu0 0.0
    %58 = vmatprep.subr.mxu0 0.0
    %59 = vmatpush1.msra.mxu0 0.0
    %60 = vmatprep.subr.mxu0 0.0
    %61 = vmatpush1.msra.mxu0 0.0
    %62 = vmatprep.subr.mxu0 0.0
    %63 = vmatpush1.msra.mxu0 0.0
    %64 = vmatprep.subr.mxu0 0.0
    %65 = vmatpush1.msra.mxu0 0.0
    %66 = vmatprep.subr.mxu0 0.0
    %67 = vmatpush1.msra.mxu0 0.0
    %68 = vmatprep.subr.mxu0 0.0
    %69 = vmatpush1.msra.mxu0 0.0
    %70 = vmatprep.subr.mxu0 0.0
    %71 = vmatpush1.msra.mxu0 0.0
    %72 = vmatprep.subr.mxu0 0.0
    %73 = vmatpush1.msra.mxu0 0.0
    %74 = vmatprep.subr.mxu0 0.0
    %75 = vmatpush1.msra.mxu0 0.0
    %76 = vmatprep.subr.mxu0 0.0
    %77 = vmatpush1.msra.mxu0 0.0
    %78 = vmatprep.subr.mxu0 0.0
    %79 = vmatpush1.msra.mxu0 0.0
    %80 = vmatprep.subr.mxu0 0.0
    %81 = vmatpush1.msra.mxu0 0.0
    %82 = vmatprep.subr.mxu0 0.0
    %83 = vmatpush1.msra.mxu0 0.0
    %84 = vmatprep.subr.mxu0 0.0
    %85 = vmatpush1.msra.mxu0 0.0
    %86 = vmatprep.subr.mxu0 0.0
    %87 = vmatpush1.msra.mxu0 0.0
    %88 = vmatprep.subr.mxu0 0.0
    %89 = vmatpush1.msra.mxu0 0.0
    %90 = vmatprep.subr.mxu0 0.0
    %91 = vmatpush1.msra.mxu0 0.0
    %92 = vmatprep.subr.mxu0 0.0
    %93 = vmatpush1.msra.mxu0 0.0
    %94 = vmatprep.subr.mxu0 0.0
    %95 = vmatpush1.msra.mxu0 0.0
    %96 = vmatprep.subr.mxu0 0.0
    %97 = vmatpush1.msra.mxu0 0.0
    %98 = vmatprep.subr.mxu0 0.0
    %99 = vmatpush1.msra.mxu0 0.0
    %100 = vmatprep.subr.mxu0 0.0
    %101 = vmatpush1.msra.mxu0 0.0
    %102 = vmatprep.subr.mxu0 0.0
    %103 = vmatpush1.msra.mxu0 0.0
    %104 = vmatprep.mubr.f32.mxu0 0.0
    %105 = vmatmul.mubr.f32.gmra.mrb[0].mxu0 %v31
    %v106 = vpop.f32.mrb[0].mxu0
    %v107 = vadd.f32 0.0, %v106
    %v108 = vpop.f32.mrb[0].mxu0
    %v109 = vadd.f32 0.0, %v108
    %110 = vdwg.mxu0
    %s111 = scalar_lea.vmem %s0, 80
    %v112 = vld [vmem:[%s111] sm:$0xff]
    %v113 = vld [vmem:[%s111 + $0x8] sm:$0xff]
    %v114 = vld [vmem:[%s111 + $0x10] sm:$0xff]
    %v115 = vld [vmem:[%s111 + $0x18] sm:$0xff]
    %v116 = vld [vmem:[%s111 + $0x20] sm:$0xff]
    %v117 = vld [vmem:[%s111 + $0x28] sm:$0xff]
    %v118 = vld [vmem:[%s111 + $0x30] sm:$0xff]
    %v119 = vld [vmem:[%s111 + $0x38] sm:$0xff]
    %v120 = vld [vmem:[%s111 + $0x40] sm:$0xf]
    %v121 = vld [vmem:[%s111 + $0x48] sm:$0xf]
    %v123 = vsel %vm33, %v120, 0
    %v126 = vsel %vm33, %v121, 0
    %128 = vmatprep.subr.mxu0 %v113
    %129 = vmatpush1.msra.mxu0 %v112
    %130 = vmatprep.subr.mxu0 %v115
    %131 = vmatpush1.msra.mxu0 %v114
    %132 = vmatprep.subr.mxu0 %v117
    %133 = vmatpush1.msra.mxu0 %v116
    %134 = vmatprep.subr.mxu0 %v119
    %135 = vmatpush1.msra.mxu0 %v118
    %136 = vmatprep.subr.mxu0 %v126
    %137 = vmatpush1.msra.mxu0 %v123
    %138 = vmatprep.subr.mxu0 0.0
    %139 = vmatpush1.msra.mxu0 0.0
    %140 = vmatprep.subr.mxu0 0.0
    %141 = vmatpush1.msra.mxu0 0.0
    %142 = vmatprep.subr.mxu0 0.0
    %143 = vmatpush1.msra.mxu0 0.0
    %144 = vmatprep.subr.mxu0 0.0
    %145 = vmatpush1.msra.mxu0 0.0
    %146 = vmatprep.subr.mxu0 0.0
    %147 = vmatpush1.msra.mxu0 0.0
    %148 = vmatprep.subr.mxu0 0.0
    %149 = vmatpush1.msra.mxu0 0.0
    %150 = vmatprep.subr.mxu0 0.0
    %151 = vmatpush1.msra.mxu0 0.0
    %152 = vmatprep.subr.mxu0 0.0
    %153 = vmatpush1.msra.mxu0 0.0
    %154 = vmatprep.subr.mxu0 0.0
    %155 = vmatpush1.msra.mxu0 0.0
    %156 = vmatprep.subr.mxu0 0.0
    %157 = vmatpush1.msra.mxu0 0.0
    %158 = vmatprep.subr.mxu0 0.0
    %159 = vmatpush1.msra.mxu0 0.0
    %160 = vmatprep.subr.mxu0 0.0
    %161 = vmatpush1.msra.mxu0 0.0
    %162 = vmatprep.subr.mxu0 0.0
    %163 = vmatpush1.msra.mxu0 0.0
    %164 = vmatprep.subr.mxu0 0.0
    %165 = vmatpush1.msra.mxu0 0.0
    %166 = vmatprep.subr.mxu0 0.0
    %167 = vmatpush1.msra.mxu0 0.0
    %168 = vmatprep.subr.mxu0 0.0
    %169 = vmatpush1.msra.mxu0 0.0
    %170 = vmatprep.subr.mxu0 0.0
    %171 = vmatpush1.msra.mxu0 0.0
    %172 = vmatprep.subr.mxu0 0.0
    %173 = vmatpush1.msra.mxu0 0.0
    %174 = vmatprep.subr.mxu0 0.0
    %175 = vmatpush1.msra.mxu0 0.0
    %176 = vmatprep.subr.mxu0 0.0
    %177 = vmatpush1.msra.mxu0 0.0
    %178 = vmatprep.subr.mxu0 0.0
    %179 = vmatpush1.msra.mxu0 0.0
    %180 = vmatprep.subr.mxu0 0.0
    %181 = vmatpush1.msra.mxu0 0.0
    %182 = vmatprep.subr.mxu0 0.0
    %183 = vmatpush1.msra.mxu0 0.0
    %184 = vmatprep.subr.mxu0 0.0
    %185 = vmatpush1.msra.mxu0 0.0
    %186 = vmatprep.subr.mxu0 0.0
    %187 = vmatpush1.msra.mxu0 0.0
    %188 = vmatprep.subr.mxu0 0.0
    %189 = vmatpush1.msra.mxu0 0.0
    %190 = vmatprep.subr.mxu0 0.0
    %191 = vmatpush1.msra.mxu0 0.0
    %192 = vmatprep.mubr.f32.mxu0 0.0
    %193 = vmatmul.mubr.f32.gmra.mrb[0].mxu0 %v31
    %v194 = vpop.f32.mrb[0].mxu0
    %v195 = vadd.f32 0.0, %v194
    %v196 = vpop.f32.mrb[0].mxu0
    %v197 = vadd.f32 0.0, %v196
    %198 = vdwg.mxu0
    %v199 = vadd.f32 %v107, %v109
    %200 = vadd.xlane.f32.xlu0 %v199
    %v201 = vpop.xlane.xlu0 %200
    %v202 = vadd.f32 %v201, 0.0
    %v203 = vadd.f32 %v195, %v197
    %204 = vadd.xlane.f32.xlu0 %v203
    %v205 = vpop.xlane.xlu0 %204
    %v206 = vadd.f32 %v202, %v205
    %v207 = vrcp.pop 512.0
    %v208 = vmul.f32 %v206, %v207
    %v209 = vsub.f32 %v107, %v208
    %v210 = vsub.f32 %v109, %v208
    %v211 = vmul.f32 %v209, %v209
    %v212 = vmul.f32 %v210, %v210
    %v213 = vadd.f32 %v211, %v212
    %214 = vadd.xlane.f32.xlu0 %v213
    %v215 = vpop.xlane.xlu0 %214
    %v216 = vadd.f32 %v215, 0.0
    %v217 = vsub.f32 %v195, %v208
    %v218 = vsub.f32 %v197, %v208
    %v219 = vmul.f32 %v217, %v217
    %v220 = vmul.f32 %v218, %v218
    %v221 = vadd.f32 %v219, %v220
    %222 = vadd.xlane.f32.xlu0 %v221
    %v223 = vpop.xlane.xlu0 %222
    %v224 = vadd.f32 %v216, %v223
    %v225 = vmul.f32 %v224, %v207
    %v226 = vld [vmem:[%s2] sm:$0xff]
    %v227 = vadd.f32 %v225, 1e-05
    %v228 = vrsqrt.pop %v227
    %v229 = vmul.f32 %v227, %v228
    %vm230 = vcmp.eq.f32.partialorder %v227, inf
    %v231 = vsel %vm230, %v227, %v229
    %vm232 = vcmp.eq.f32.partialorder %v227, 0.0
    %v233 = vand.u32 %v227, 2147483648
    %v234 = vsel %vm232, %v233, %v231
    %v235 = vrcp.pop %v234
    %v236 = vmul.f32 %v226, %v235
    %v237 = vld [vmem:[%s3] sm:$0xff]
    %239 = vset.pattern.permute.xlu0 0
    %240 = vperm.xlu0 %239, %v236
    %v241 = vpop.permute.xlu0 %240
    %v243 = vmul.f32 %v209, %v241
    %v244 = vmul.f32 %v210, %v241
    %246 = vset.pattern.permute.xlu0 0
    %247 = vperm.xlu0 %246, %v237
    %v248 = vpop.permute.xlu0 %247
    %v250 = vadd.f32 %v243, %v248
    %v251 = vadd.f32 %v244, %v248
    %v252 = vmax.f32 %v250, 0.0
    %v253 = vmax.f32 %v251, 0.0
    %254 = vst [vmem:[#allocation2] sm:$0xff] %v252
    %255 = vst [vmem:[#allocation2 + $0x8] sm:$0xff] %v253
    %v256 = vmul.f32 %v217, %v241
    %v257 = vmul.f32 %v218, %v241
    %v258 = vadd.f32 %v256, %v248
    %v259 = vadd.f32 %v257, %v248
    %v260 = vmax.f32 %v258, 0.0
    %v261 = vmax.f32 %v259, 0.0
    %s262 = scalar_lea.vmem [#allocation2], 16
    %263 = vst [vmem:[%s262] sm:$0xff] %v260
    %264 = vst [vmem:[%s262 + $0x8] sm:$0xff] %v261
    // Predicated region
    $region18: #{tpu_custom_call.1} parent=1 // pred_check
      _
    $region19: #{tpu_custom_call.1} parent=1 // pred_check_branch
      %266 = sbr.rel (0) target = $region21
    $region20: #{tpu_custom_call.1} parent=1 // pred_region
      %s268 = ssub.s32 512, 512
      %269 = vsyncadd [#allocation3], %s268
      %s270 = sshll.u32 [#allocation2], 4
      %s271 = int_to_ptr.vmem [resolvable:$true] %s270
      %276 = dma.vmem_to_hbm [thread:$0]  %s271, 512, %s4, [#allocation3], 256, 256, 16
    $region21: #{tpu_custom_call.1} parent=1 // pred_fallthru
      _
    // Predicated region
    $region22: #{tpu_custom_call.1} parent=1 // pred_check
      _
    $region23: #{tpu_custom_call.1} parent=1 // pred_check_branch
      %278 = sbr.rel (0) target = $region25
    $region24: #{tpu_custom_call.1} parent=1 // pred_region
      %279 = dma.done [#allocation3], 512
    $region25: #{tpu_custom_call.1} parent=1 // pred_fallthru
      _
    %280 = vsyncpa [#allocation3], 1

</llo_original>
